<compile_context>
chip_gen: v5e
topology: v5e:2x2
jax: 0.10.0
libtpu: 0.0.40
codegen_flags: <defaults>
</compile_context>

<pallas_src>
import functools

import jax
import jax.numpy as jnp
from jax.experimental import pallas as pl
from jax.experimental.pallas import tpu as pltpu


def _gate_kernel(t0_ref, t1_ref, o_ref, *, compute_dtype):
    # `t1.sub(2)` in the PyTorch source is NOT in-place (that would be
    # `sub_`), so its result is discarded and t1 is used unmodified here.
    t0 = jnp.tanh(t0_ref[...].astype(compute_dtype))
    t1 = jax.nn.sigmoid(t1_ref[...].astype(compute_dtype))
    o_ref[...] = (t1 * t0).astype(o_ref.dtype)


def _vmem_capacity_bytes():
    """Per-TensorCore VMEM capacity; conservative default if unqueryable."""
    try:
        cap = int(pltpu.get_tpu_info().vmem_capacity_bytes)
        if cap > 0:
            return cap
    except Exception:
        pass
    return 64 << 20  # v7x per-TC size: the smallest of current generations


def _pick_lane_width(n):
    """Largest convenient multiple of 128 dividing n (lane-dense stores);
    fall back to the full flattened width for awkward sizes."""
    for lane in (512, 384, 256, 128):
        if n % lane == 0:
            return lane
    return n


def _choose_tiles(batch, rows, lane, itemsize, budget_bytes):
    """Pick (batch_tile, row_tile) so one block stays under budget_bytes,
    keeps the last two dims (rows, lane) layout-friendly (rows tile is a
    multiple of 8 or the full dim), and the grid has >= 2 steps whenever the
    problem is big enough to benefit from pipelining / 2-TC sharding."""
    row_bytes = lane * itemsize

    # --- rows per block ---
    if rows <= 8 or rows * row_bytes <= budget_bytes:
        tr = rows                                   # full dim (always legal)
    else:
        fit = max(8, (budget_bytes // row_bytes) // 8 * 8)
        best = None
        for t in range(8, min(rows, fit) + 1, 8):   # prefer exact divisors
            if rows % t == 0:
                best = t
        tr = best if best is not None else min(fit, (rows // 8) * 8)

    # --- whole batches per block (amortizes ~0.35us per grid step) ---
    tb = 1
    if tr == rows:
        per_batch = rows * row_bytes
        for t in range(1, batch + 1):
            if batch % t == 0 and t * per_batch <= budget_bytes:
                tb = t

    # --- never collapse a non-trivial problem into a single grid step ---
    if tb == batch and tr == rows and tb * tr * row_bytes > (1 << 20):
        if batch > 1:
            tb = max(d for d in range(1, batch) if batch % d == 0)
        elif rows >= 16:
            tr = -(-((rows + 1) // 2) // 8) * 8     # ~half the rows, 8-aligned
    return tb, tr


def gate_forward(x):
    """x: (B, C, H, W) with C even. Returns sigmoid(x[:, C//2:]) * tanh(x[:, :C//2])."""
    B, C, H, W = x.shape
    assert C % 2 == 0, "channel dim must be divisible by ngates=2"
    c = C // 2
    n = c * H * W                                   # flattened per-gate slab per batch
    itemsize = jnp.dtype(x.dtype).itemsize

    # Free, contiguous reshape: gate halves become index 0/1 of axis 1 and
    # each (c, H, W) half becomes a lane-dense (rows, lane) trailing view.
    lane = _pick_lane_width(n)
    rows = n // lane
    xr = x.reshape(B, 2, rows, lane)

    capacity = _vmem_capacity_bytes()
    budget = min(6 << 20, max(1 << 20, capacity // 16))
    tb, tr = _choose_tiles(B, rows, lane, itemsize, budget)

    grid = (pl.cdiv(B, tb), pl.cdiv(rows, tr))
    block_bytes = tb * tr * lane * itemsize
    # 2 inputs + 1 output, each double-buffered, plus headroom for compiler scratch.
    needed = 6 * block_bytes
    vmem_limit = int(min(capacity * 7 // 8,
                         max(needed + needed // 4 + (1 << 20), 16 << 20)))

    # bf16 inputs: keep transcendentals in bf16 (halves EUP pushes on v6e/v7x;
    # Mosaic legalizes via f32 on v5e, so it is never worse).  f32 stays f32.
    compute_dtype = jnp.bfloat16 if x.dtype == jnp.bfloat16 else jnp.float32

    out_elems = B * n
    cost = pl.CostEstimate(
        flops=2 * out_elems,
        transcendentals=2 * out_elems,
        bytes_accessed=3 * out_elems * itemsize,    # read x once (2n/B-batch), write n
    )

    in_block = (tb, None, tr, lane)   # gate axis squeezed -> kernel sees (tb, tr, lane)
    out_block = (tb, tr, lane)

    out = pl.pallas_call(
        functools.partial(_gate_kernel, compute_dtype=compute_dtype),
        out_shape=jax.ShapeDtypeStruct((B, rows, lane), x.dtype),
        grid_spec=pl.GridSpec(
            grid=grid,
            in_specs=[
                pl.BlockSpec(in_block, lambda b, r: (b, 0, r, 0)),   # tanh half
                pl.BlockSpec(in_block, lambda b, r: (b, 1, r, 0)),   # sigmoid half
            ],
            out_specs=pl.BlockSpec(out_block, lambda b, r: (b, r, 0)),
        ),
        compiler_params=pltpu.CompilerParams(
            dimension_semantics=("parallel", "parallel"),
            vmem_limit_bytes=vmem_limit,
        ),
        cost_estimate=cost,
    )(xr, xr)   # same array passed twice -> one HBM operand, two tile views

    return out.reshape(B, c, H, W)


def gate_reference(x):
    """Pure-JAX reference matching the PyTorch forward."""
    c = x.shape[1] // 2
    return jax.nn.sigmoid(x[:, c:]) * jnp.tanh(x[:, :c])


if __name__ == "__main__":
    key = jax.random.PRNGKey(0)
    # small NCHW input consistent with the module (C must be even)
    x = jax.random.normal(key, (2, 4, 16, 16), dtype=jnp.float32)

    out = jax.block_until_ready(gate_forward(x))
    ref = gate_reference(x)

    assert out.shape == (2, 2, 16, 16)
    assert jnp.allclose(out, ref, atol=1e-6, rtol=1e-6), "mismatch vs reference"
    print("KERNEL_OK")
</pallas_src>

<mosaic_0001>
module attributes {stable_mosaic.version = 11 : i64} {
  func.func @_gate_kernel(%arg0: i32, %arg1: i32, %arg2: memref<2x1x1x512xf32, #tpu.memory_space<vmem>>, %arg3: memref<2x1x1x512xf32, #tpu.memory_space<vmem>>, %arg4: memref<2x1x512xf32, #tpu.memory_space<vmem>>) attributes {dimension_semantics = [#tpu.dimension_semantics<parallel>, #tpu.dimension_semantics<parallel>], iteration_bounds = array<i64: 1, 1>, scalar_prefetch = 0 : i64, scratch_operands = 0 : i64, tpu.core_type = #tpu.core_type<tc>, window_params = [{transform_indices = @transform_0, window_bounds = array<i64: 2, 1, 1, 512>}, {transform_indices = @transform_1, window_bounds = array<i64: 2, 1, 1, 512>}, {transform_indices = @transform_2, window_bounds = array<i64: 2, 1, 512>}]} {
    %c0 = arith.constant 0 : index
    %c0_0 = arith.constant 0 : index
    %c0_1 = arith.constant 0 : index
    %c0_2 = arith.constant 0 : index
    %0 = vector.load %arg2[%c0, %c0_0, %c0_1, %c0_2] : memref<2x1x1x512xf32, #tpu.memory_space<vmem>>, vector<2x1x1x512xf32>
    %1 = vector.shape_cast %0 : vector<2x1x1x512xf32> to vector<2x1x512xf32>
    %2 = math.tanh %1 : vector<2x1x512xf32>
    %c0_3 = arith.constant 0 : index
    %c0_4 = arith.constant 0 : index
    %c0_5 = arith.constant 0 : index
    %c0_6 = arith.constant 0 : index
    %3 = vector.load %arg3[%c0_3, %c0_4, %c0_5, %c0_6] : memref<2x1x1x512xf32, #tpu.memory_space<vmem>>, vector<2x1x1x512xf32>
    %4 = vector.shape_cast %3 : vector<2x1x1x512xf32> to vector<2x1x512xf32>
    %5 = arith.negf %4 : vector<2x1x512xf32>
    %6 = math.exp %5 : vector<2x1x512xf32>
    %cst = arith.constant 1.000000e+00 : f32
    %7 = vector.broadcast %cst : f32 to vector<2x1x512xf32>
    %8 = arith.addf %7, %6 : vector<2x1x512xf32>
    %9 = arith.divf %7, %8 : vector<2x1x512xf32>
    %10 = arith.mulf %9, %2 : vector<2x1x512xf32>
    %c0_7 = arith.constant 0 : index
    %c0_8 = arith.constant 0 : index
    %c0_9 = arith.constant 0 : index
    %11 = vector.load %arg4[%c0_7, %c0_8, %c0_9] : memref<2x1x512xf32, #tpu.memory_space<vmem>>, vector<2x1x512xf32>
    tpu.vector_store %arg4[%c0_7, %c0_8, %c0_9], %10 {strides = array<i32>} : memref<2x1x512xf32, #tpu.memory_space<vmem>>, vector<2x1x512xf32>,
    return
  }
  func.func @transform_0(%arg0: i32, %arg1: i32) -> (i32, i32, i32, i32) {
    %c0_i32 = arith.constant 0 : i32
    %c0_i32_0 = arith.constant 0 : i32
    %c0_i32_1 = arith.constant 0 : i32
    return %arg0, %c0_i32, %arg1, %c0_i32_0 : i32, i32, i32, i32
  }
  func.func @transform_1(%arg0: i32, %arg1: i32) -> (i32, i32, i32, i32) {
    %c1_i32 = arith.constant 1 : i32
    %c0_i32 = arith.constant 0 : i32
    %c0_i32_0 = arith.constant 0 : i32
    return %arg0, %c1_i32, %arg1, %c0_i32 : i32, i32, i32, i32
  }
  func.func @transform_2(%arg0: i32, %arg1: i32) -> (i32, i32, i32) {
    %c0_i32 = arith.constant 0 : i32
    %c0_i32_0 = arith.constant 0 : i32
    return %arg0, %arg1, %c0_i32 : i32, i32, i32
  }
}

</mosaic_0001>

<llo_original>
// kernel: tpu_custom_call.1
$region0: #{tpu_custom_call.1}
  #allocation0 [shape = 'u32[]', space=smem, size = 0x4, offset = 0x4, fixed_abs, tag = 'smem constant byte address 0x4 - core index']
  #allocation1 [shape = 'u32[72,128]{1,0:T(1,128)}', space=vmem, size = 0x9000, scoped, tag = 'internal scratch']
  %s0 = inlined_call_operand.hbm [shape: f32[2,2,1,512], index: 0, kind: input, shape index: {}]
  %s1 = inlined_call_operand.hbm [shape: f32[2,2,1,512], index: 1, kind: input, shape index: {}]
  %s2 = inlined_call_operand.hbm [shape: f32[2,1,512], index: 2, kind: output, shape index: {}]
  %s3 = sld [smem:[#allocation0]]
  $region26: #{tpu_custom_call.1} parent=0
    _
  %s5 = ssub.s32 1, %s3
  %s6 = scalar_select 0, %s5, %s3
  $region1: #{tpu_custom_call.1} parent=0
    #allocation2 [shape = 'u8[4096]{0}', space=vmem, size = 0x1000, scoped, tag = 'input window, operand 0, single buffered']
    #allocation3 [shape = 's32[1]{0}', space=sflag, size = 0x4, scoped, tag = 'scoped memory for tpu_custom_call.1']
    #allocation4 [shape = 's32[1]{0}', space=sflag, size = 0x4, scoped, tag = 'scoped memory for tpu_custom_call.1']
    #allocation5 [shape = 'u8[4096]{0}', space=vmem, size = 0x1000, scoped, tag = 'input window, operand 1, single buffered']
    #allocation6 [shape = 's32[1]{0}', space=sflag, size = 0x4, scoped, tag = 'scoped memory for tpu_custom_call.1']
    #allocation7 [shape = 'u8[4096]{0}', space=vmem, size = 0x1000, scoped, tag = 'output window, operand 0, single buffered']
    %7 = vsyncpa [#allocation3], 0
    %8 = vsyncpa [#allocation6], 0
    %9 = vsyncpa [#allocation4], 0
    // Predicated region
    $region2: #{tpu_custom_call.1} parent=1 // pred_check
      _
    $region3: #{tpu_custom_call.1} parent=1 // pred_check_branch
      %11 = sbr.rel (0) target = $region5
    $region4: #{tpu_custom_call.1} parent=1 // pred_region
      %13 = vsyncadd [#allocation3], 0
      %s14 = sshll.u32 %s0, 4
      %s15 = int_to_ptr.hbm [resolvable:$true] %s14
      %s16 = sshll.u32 [#allocation2], 4
      %s17 = int_to_ptr.vmem [resolvable:$true] %s16
      %22 = dma.hbm_to_vmem [thread:$0]  %s15, 128, %s17, [#allocation3], 128, 64, 4
    $region5: #{tpu_custom_call.1} parent=1 // pred_fallthru
      _
    // Predicated region
    $region6: #{tpu_custom_call.1} parent=1 // pred_check
      _
    $region7: #{tpu_custom_call.1} parent=1 // pred_check_branch
      %24 = sbr.rel (0) target = $region9
    $region8: #{tpu_custom_call.1} parent=1 // pred_region
      %26 = vsyncadd [#allocation6], 0
      %s27 = scalar_lea.hbm %s1, 4
      %s28 = sshll.u32 %s27, 4
      %s29 = int_to_ptr.hbm [resolvable:$true] %s28
      %s30 = sshll.u32 [#allocation5], 4
      %s31 = int_to_ptr.vmem [resolvable:$true] %s30
      %36 = dma.hbm_to_vmem [thread:$0]  %s29, 128, %s31, [#allocation6], 128, 64, 4
    $region9: #{tpu_custom_call.1} parent=1 // pred_fallthru
      _
    // Predicated region
    $region10: #{tpu_custom_call.1} parent=1 // pred_check
      _
    $region11: #{tpu_custom_call.1} parent=1 // pred_check_branch
      %38 = sbr.rel (0) target = $region13
    $region12: #{tpu_custom_call.1} parent=1 // pred_region
      %40 = dma.done [#allocation3], 128
    $region13: #{tpu_custom_call.1} parent=1 // pred_fallthru
      _
    // Predicated region
    $region14: #{tpu_custom_call.1} parent=1 // pred_check
      _
    $region15: #{tpu_custom_call.1} parent=1 // pred_check_branch
      %42 = sbr.rel (0) target = $region17
    $region16: #{tpu_custom_call.1} parent=1 // pred_region
      %44 = dma.done [#allocation6], 128
    $region17: #{tpu_custom_call.1} parent=1 // pred_fallthru
      _
    %v45 = vld [vmem:[#allocation2] sm:$0xf]
    %v46 = vld [vmem:[#allocation2 + $0x4] sm:$0xf]
    %v47 = vtanh.pop %v45
    %v48 = vtanh.pop %v46
    %v49 = vld [vmem:[#allocation5] sm:$0xf]
    %v50 = vld [vmem:[#allocation5 + $0x4] sm:$0xf]
    %v51 = vxor.u32 %v49, 2147483648
    %v52 = vxor.u32 %v50, 2147483648
    %v53 = vmul.f32 %v51, 1.442695
    %v54 = vpow.pop %v53
    %v55 = vmul.f32 %v52, 1.442695
    %v56 = vpow.pop %v55
    %v57 = vadd.f32 %v54, 1.0
    %v58 = vadd.f32 %v56, 1.0
    %v59 = vrcp.pop %v57
    %v60 = vmul.f32 %v57, %v59
    %v61 = vsub.f32 1.0, %v60
    %v62 = vmul.f32 %v59, %v61
    %v63 = vadd.f32 %v59, %v62
    %vm64 = vweird.f32 %v57
    %vm65 = vweird.f32 %v59
    %vm66 = vmor %vm64, %vm65
    %v67 = vsel %vm66, %v59, %v63
    %v68 = vand.u32 2147483647, %v57
    %vm69 = vcmp.eq.f32.partialorder %v68, 8.507059e+37
    %v70 = vand.u32 %v57, 2147483648
    %v71 = vor.u32 1.1754944e-38, %v70
    %v72 = vsel %vm69, %v71, %v67
    %v73 = vmul.f32 1.0, %v72
    %v74 = vrcp.pop %v58
    %v75 = vmul.f32 %v58, %v74
    %v76 = vsub.f32 1.0, %v75
    %v77 = vmul.f32 %v74, %v76
    %v78 = vadd.f32 %v74, %v77
    %vm79 = vweird.f32 %v58
    %vm80 = vweird.f32 %v74
    %vm81 = vmor %vm79, %vm80
    %v82 = vsel %vm81, %v74, %v78
    %v83 = vand.u32 2147483647, %v58
    %vm84 = vcmp.eq.f32.partialorder %v83, 8.507059e+37
    %v85 = vand.u32 %v58, 2147483648
    %v86 = vor.u32 1.1754944e-38, %v85
    %v87 = vsel %vm84, %v86, %v82
    %v88 = vmul.f32 1.0, %v87
    %v89 = vmul.f32 %v73, %v47
    %v90 = vmul.f32 %v88, %v48
    %v91 = vlaneseq
    %vm92 = vcmp.ge.s32.totalorder %v91, 0
    %vm93 = vcmp.lt.s32.totalorder %v91, 512
    %vm94 = vmand %vm92, %vm93
    %95 = vst.msk [vmem:[#allocation7] sm:$0xf] %vm94, %v89
    %96 = vst.msk [vmem:[#allocation7 + $0x4] sm:$0xf] %vm94, %v90
    // Predicated region
    $region18: #{tpu_custom_call.1} parent=1 // pred_check
      _
    $region19: #{tpu_custom_call.1} parent=1 // pred_check_branch
      %98 = sbr.rel (0) target = $region21
    $region20: #{tpu_custom_call.1} parent=1 // pred_region
      %100 = vsyncadd [#allocation4], 0
      %s101 = sshll.u32 [#allocation7], 4
      %s102 = int_to_ptr.vmem [resolvable:$true] %s101
      %s103 = sshll.u32 %s2, 4
      %s104 = int_to_ptr.hbm [resolvable:$true] %s103
      %109 = dma.vmem_to_hbm [thread:$0]  %s102, 128, %s104, [#allocation4], 64, 64, 4
    $region21: #{tpu_custom_call.1} parent=1 // pred_fallthru
      _
    // Predicated region
    $region22: #{tpu_custom_call.1} parent=1 // pred_check
      _
    $region23: #{tpu_custom_call.1} parent=1 // pred_check_branch
      %111 = sbr.rel (0) target = $region25
    $region24: #{tpu_custom_call.1} parent=1 // pred_region
      %113 = dma.done [#allocation4], 128
    $region25: #{tpu_custom_call.1} parent=1 // pred_fallthru
      _
    %114 = vsyncpa [#allocation3], 1
    %115 = vsyncpa [#allocation6], 1
    %116 = vsyncpa [#allocation4], 1

</llo_original>
